<compile_context>
chip_gen: v7x
topology: tpu7x:2x2x1
jax: 0.10.0
libtpu: 0.0.40
codegen_flags: <defaults>
</compile_context>

<pallas_src>
import jax
import jax.numpy as jnp
from jax.experimental import pallas as pl
from jax.experimental.pallas import tpu as pltpu

LANE = 128          # lane width of a vreg
SUBLANE = 8         # sublane height of a vreg
TM_MAX_ROWS = 4096  # max rows-of-128 per grid step  -> 512K batch elems/step
MIN_GRID_STEPS = 8  # keep >= 8 parallel steps so v7x's 2 TCs both get work
PALLAS_MIN_ROWS = 1024  # below this batch size, plain JAX is faster
VMEM_LIMIT_BYTES = 32 * 1024 * 1024


def linear_kernel(x_ref, w_ref, b_ref, o_ref):
    # x_ref: (in_features, TM, 128) VMEM block, batch on sublanes+lanes.
    # w_ref: (out_features, in_features) in SMEM (scalar reads).
    # b_ref: (out_features, 1) in SMEM (scalar reads).
    # o_ref: (out_features, TM, 128) VMEM block (full-vreg unmasked stores).
    in_features = x_ref.shape[0]
    out_features = o_ref.shape[0]
    for j in range(out_features):          # static trip count (=1 here)
        acc = x_ref[0] * w_ref[j, 0] + b_ref[j, 0]
        for k in range(1, in_features):    # static trip count (=2 here)
            acc = acc + x_ref[k] * w_ref[j, k]
        o_ref[j] = acc.astype(o_ref.dtype)


def linear_forward(x, weight, bias, *, min_rows_for_pallas=PALLAS_MIN_ROWS):
    """x: (N, in_features); weight: (out, in); bias: (out,) -> (N, out)."""
    n, in_features = x.shape
    out_features = weight.shape[0]

    # Small-N fast path: a standalone Pallas call is pure launch overhead here.
    if n < min_rows_for_pallas:
        return x @ weight.T + bias

    # ---- Tiling: near-equal tiles, sublane-aligned, bounded VMEM footprint.
    n_rows = pl.cdiv(n, LANE)  # rows of 128 batch elements
    target_tiles = max(
        pl.cdiv(n_rows, TM_MAX_ROWS),                 # respect VMEM budget
        min(MIN_GRID_STEPS, pl.cdiv(n_rows, SUBLANE)),  # enough steps for 2 TCs
    )
    tm = pl.cdiv(pl.cdiv(n_rows, target_tiles), SUBLANE) * SUBLANE
    num_tiles = pl.cdiv(n_rows, tm)
    n_rows_pad = num_tiles * tm
    n_pad = n_rows_pad * LANE

    # ---- Feature-major, sublane+lane dense layout (transpose+pad+reshape
    # fuse into a single copy fusion in XLA).
    xt = jnp.swapaxes(x, 0, 1)                     # (in_features, N)
    if n_pad != n:
        xt = jnp.pad(xt, ((0, 0), (0, n_pad - n)))
    x_fm = xt.reshape(in_features, n_rows_pad, LANE)

    w_smem = weight.reshape(out_features, in_features)
    b_smem = bias.reshape(out_features, 1)

    out = pl.pallas_call(
        linear_kernel,
        out_shape=jax.ShapeDtypeStruct((out_features, n_rows_pad, LANE),
                                       x.dtype),
        grid=(num_tiles,),
        in_specs=[
            pl.BlockSpec((in_features, tm, LANE), lambda i: (0, i, 0)),
            pl.BlockSpec(memory_space=pltpu.SMEM),   # whole weight in SMEM
            pl.BlockSpec(memory_space=pltpu.SMEM),   # whole bias in SMEM
        ],
        out_specs=pl.BlockSpec((out_features, tm, LANE), lambda i: (0, i, 0)),
        compiler_params=pltpu.CompilerParams(
            dimension_semantics=("parallel",),
            vmem_limit_bytes=VMEM_LIMIT_BYTES,
        ),
    )(x_fm, w_smem, b_smem)

    # Back to PyTorch layout (N, out_features); padded tail (holds bias, not
    # zeros) is sliced off.  For out_features=1 the final .T is a free reshape.
    return out.reshape(out_features, n_pad)[:, :n].T


if __name__ == "__main__":
    in_features, out_features = 2, 1

    key = jax.random.PRNGKey(0)
    k_x_small, k_x_big, k_w, k_b = jax.random.split(key, 4)

    # Deterministic param init mimicking nn.Linear's U(-1/sqrt(fan_in), +...).
    bound = 1.0 / jnp.sqrt(float(in_features))
    weight = jax.random.uniform(
        k_w, (out_features, in_features), jnp.float32, minval=-bound, maxval=bound
    )
    bias = jax.random.uniform(
        k_b, (out_features,), jnp.float32, minval=-bound, maxval=bound
    )

    # 1) Tiny batch consistent with the module -> exercises the fast path.
    x_small = jax.random.normal(k_x_small, (8, in_features), jnp.float32)
    out_small = jax.block_until_ready(linear_forward(x_small, weight, bias))
    ref_small = x_small @ weight.T + bias
    assert out_small.shape == (8, out_features)
    assert jnp.allclose(out_small, ref_small, atol=1e-5, rtol=1e-5)

    # 2) Still-small batch (~32 KiB), non-multiple of 128, that actually runs
    #    the Pallas kernel and exercises the padded-tile path.
    n_big = 4100
    x_big = jax.random.normal(k_x_big, (n_big, in_features), jnp.float32)
    out_big = jax.block_until_ready(linear_forward(x_big, weight, bias))
    ref_big = x_big @ weight.T + bias
    assert out_big.shape == (n_big, out_features)
    assert jnp.allclose(out_big, ref_big, atol=1e-5, rtol=1e-5)

    print("KERNEL_OK")
</pallas_src>

<mosaic_0001>
module attributes {stable_mosaic.version = 11 : i64} {
  func.func @linear_kernel(%arg0: i32, %arg1: memref<2x8x128xf32, #tpu.memory_space<vmem>>, %arg2: memref<1x2xf32, #tpu.memory_space<smem>>, %arg3: memref<1x1xf32, #tpu.memory_space<smem>>, %arg4: memref<1x8x128xf32, #tpu.memory_space<vmem>>) attributes {dimension_semantics = [#tpu.dimension_semantics<parallel>], iteration_bounds = array<i64: 5>, scalar_prefetch = 0 : i64, scratch_operands = 0 : i64, tpu.core_type = #tpu.core_type<tc>, window_params = [{transform_indices = @transform_0, window_bounds = array<i64: 2, 8, 128>}, {transform_indices = @transform_1, window_bounds = array<i64: 1, 2>}, {transform_indices = @transform_2, window_bounds = array<i64: 1, 1>}, {transform_indices = @transform_3, window_bounds = array<i64: 1, 8, 128>}]} {
    %c0 = arith.constant 0 : index
    %c0_0 = arith.constant 0 : index
    %c0_1 = arith.constant 0 : index
    %0 = vector.load %arg1[%c0, %c0_0, %c0_1] : memref<2x8x128xf32, #tpu.memory_space<vmem>>, vector<1x8x128xf32>
    %1 = vector.shape_cast %0 : vector<1x8x128xf32> to vector<8x128xf32>
    %c0_2 = arith.constant 0 : index
    %c0_3 = arith.constant 0 : index
    %2 = memref.load %arg2[%c0_2, %c0_3] : memref<1x2xf32, #tpu.memory_space<smem>>
    %3 = vector.broadcast %2 : f32 to vector<8x128xf32>
    %4 = arith.mulf %1, %3 : vector<8x128xf32>
    %c0_4 = arith.constant 0 : index
    %c0_5 = arith.constant 0 : index
    %5 = memref.load %arg3[%c0_4, %c0_5] : memref<1x1xf32, #tpu.memory_space<smem>>
    %6 = vector.broadcast %5 : f32 to vector<8x128xf32>
    %7 = arith.addf %4, %6 : vector<8x128xf32>
    %c1 = arith.constant 1 : index
    %c0_6 = arith.constant 0 : index
    %c0_7 = arith.constant 0 : index
    %8 = vector.load %arg1[%c1, %c0_6, %c0_7] : memref<2x8x128xf32, #tpu.memory_space<vmem>>, vector<1x8x128xf32>
    %9 = vector.shape_cast %8 : vector<1x8x128xf32> to vector<8x128xf32>
    %c0_8 = arith.constant 0 : index
    %c1_9 = arith.constant 1 : index
    %10 = memref.load %arg2[%c0_8, %c1_9] : memref<1x2xf32, #tpu.memory_space<smem>>
    %11 = vector.broadcast %10 : f32 to vector<8x128xf32>
    %12 = arith.mulf %9, %11 : vector<8x128xf32>
    %13 = arith.addf %7, %12 : vector<8x128xf32>
    %c0_10 = arith.constant 0 : index
    %c0_11 = arith.constant 0 : index
    %c0_12 = arith.constant 0 : index
    %14 = vector.load %arg4[%c0_10, %c0_11, %c0_12] : memref<1x8x128xf32, #tpu.memory_space<vmem>>, vector<1x8x128xf32>
    %15 = vector.shape_cast %14 : vector<1x8x128xf32> to vector<8x128xf32>
    %16 = vector.shape_cast %13 : vector<8x128xf32> to vector<1x8x128xf32>
    tpu.vector_store %arg4[%c0_10, %c0_11, %c0_12], %16 {strides = array<i32>} : memref<1x8x128xf32, #tpu.memory_space<vmem>>, vector<1x8x128xf32>,
    return
  }
  func.func @transform_0(%arg0: i32) -> (i32, i32, i32) {
    %c0_i32 = arith.constant 0 : i32
    %c0_i32_0 = arith.constant 0 : i32
    %c0_i32_1 = arith.constant 0 : i32
    return %c0_i32, %arg0, %c0_i32_0 : i32, i32, i32
  }
  func.func @transform_1(%arg0: i32) -> (i32, i32) {
    %c0_i32 = arith.constant 0 : i32
    %c0_i32_0 = arith.constant 0 : i32
    %c0_i32_1 = arith.constant 0 : i32
    return %c0_i32, %c0_i32_0 : i32, i32
  }
  func.func @transform_2(%arg0: i32) -> (i32, i32) {
    %c0_i32 = arith.constant 0 : i32
    %c0_i32_0 = arith.constant 0 : i32
    %c0_i32_1 = arith.constant 0 : i32
    return %c0_i32, %c0_i32_0 : i32, i32
  }
  func.func @transform_3(%arg0: i32) -> (i32, i32, i32) {
    %c0_i32 = arith.constant 0 : i32
    %c0_i32_0 = arith.constant 0 : i32
    %c0_i32_1 = arith.constant 0 : i32
    return %c0_i32, %arg0, %c0_i32_0 : i32, i32, i32
  }
}

</mosaic_0001>

<llo_original>
// kernel: tpu_custom_call.1
$region0: #{tpu_custom_call.1}
  #allocation0 [shape = 'u32[]', space=smem, size = 0x4, offset = 0x4, fixed_abs, tag = 'smem constant byte address 0x4 - core index']
  #allocation1 [shape = 'u32[144,128]{1,0:T(1,128)}', space=vmem, size = 0x12000, scoped, tag = 'internal scratch']
  #allocation2 [shape = 'f32[1,1]{1,0:T(1,128)S(6)}', space=smem, size = 0x200, scoped, tag = 'scoped memory for tpu_custom_call.1']
  %s0 = inlined_call_operand.hbm [shape: f32[2,40,128], index: 0, kind: input, shape index: {}]
  %s1 = inlined_call_operand.vmem [shape: f32[1,2], index: 1, kind: input, shape index: {}]
  %s2 = inlined_call_operand.<no memory space> [shape: f32[1,1], index: 2, kind: input, shape index: {}]
  %s3 = inlined_call_operand.hbm [shape: f32[1,40,128], index: 3, kind: output, shape index: {}]
  %s4 = sld [smem:[#allocation0]]
  $region53: #{tpu_custom_call.1} parent=0
    _
  %s6 = ssub.s32 1, %s4
  %s7 = scalar_select 0, %s6, %s4
  %8 = sst [smem:[#allocation2]] %s2
  $region1: #{tpu_custom_call.1} parent=0
    #allocation3 [shape = 'u8[16384]{0}', space=vmem, size = 0x4000, scoped, tag = 'input window, operand 0']
    #allocation4 [shape = 's32[2]{0}', space=sflag, size = 0x8, scoped, tag = 'scoped memory for tpu_custom_call.1']
    #allocation5 [shape = 's32[2]{0}', space=sflag, size = 0x8, scoped, tag = 'scoped memory for tpu_custom_call.1']
    #allocation6 [shape = 's32[2]{0}', space=sflag, size = 0x8, scoped, tag = 'scoped memory for tpu_custom_call.1']
    #allocation7 [shape = 'u8[512]{0}', space=smem, size = 0x200, scoped, tag = 'input window, operand 1, single buffered']
    #allocation8 [shape = 'u8[8192]{0}', space=vmem, size = 0x2000, scoped, tag = 'output window, operand 0']
    %9 = vsyncpa [#allocation4], 0
    %s10 = scalar_lea.sflag [#allocation4], 1
    %11 = vsyncpa %s10, 0
    %12 = vsyncpa [#allocation6], 0
    %13 = vsyncpa [#allocation5], 0
    %s14 = scalar_lea.sflag [#allocation5], 1
    %15 = vsyncpa %s14, 0
    loop: start=0, step=1, limit=7
    $region2: #{tpu_custom_call.1} parent=1 // loop_pre_header
      _
    $region3: #{tpu_custom_call.1} parent=1 // loop_header
      %s17 = sphi 0, %s21
      %p18 = scmp.ge.s32.totalorder %s17, 7
      %s27 = sphi 0, %s29
      %s30 = sphi 0, %s27
      %s31 = sphi 0, %s30
      %s47 = sphi 0, %s31
      %s51 = sphi 0, %s51
      %s53 = sphi 0, %s51
      %s54 = sphi 0, %s53
      %s68 = sphi 0, %s54
      %s72 = sphi 0, %s72
      %s74 = sphi 0, %s72
      %s75 = sphi 0, %s74
      %s89 = sphi 0, %s75
      %s95 = sphi 0, %s97
      %s98 = sphi 0, %s95
      %s99 = sphi 0, %s98
      %s115 = sphi 0, %s99
    $region4: #{tpu_custom_call.1} parent=1 // loop_header_branch
      %20 = sbr.rel (%p18) target = $region8
    $region5: #{tpu_custom_call.1} parent=1 // loop_body
      %s22 = ssub.s32 %s17, 1
      %s23 = ssub.s32 %s17, 2
      %s24 = sadd.s32 %s17, 1
      %s25 = ssub.s32 %s17, %s24
      %p26 = scmp.eq.s32.totalorder %s25, 0
      %s28 = sadd.s32 %s27, 1
      %s29 = scalar_select %p26, %s27, %s28
      %p32 = pneg %p26
      %p33 = scmp.eq.s32.totalorder %s17, 4
      %p34 = por %p32, %p33
      %p35 = scmp.ne.s32.totalorder %s27, %s30
      %p36 = scmp.eq.s32.totalorder %s17, 0
      %p37 = por %p35, %p36
      %p38 = scmp.ne.s32.totalorder %s27, %s30
      %p39 = scmp.eq.s32.totalorder %s22, 4
      %p40 = por %p38, %p39
      %p41 = scmp.ne.s32.totalorder %s30, %s31
      %p42 = scmp.eq.s32.totalorder %s22, 0
      %p43 = por %p41, %p42
      %p44 = scmp.ne.s32.totalorder %s30, %s31
      %p45 = scmp.eq.s32.totalorder %s23, 4
      %p46 = por %p44, %p45
      %p48 = scmp.ne.s32.totalorder %s31, %s47
      %p49 = scmp.eq.s32.totalorder %s23, 0
      %p50 = por %p48, %p49
      %s52 = sadd.s32 %s51, 1
      %p55 = scmp.eq.s32.totalorder %s17, 4
      %p56 = scmp.ne.s32.totalorder %s51, %s53
      %p57 = scmp.eq.s32.totalorder %s17, 0
      %p58 = por %p56, %p57
      %p59 = scmp.ne.s32.totalorder %s51, %s53
      %p60 = scmp.eq.s32.totalorder %s22, 4
      %p61 = por %p59, %p60
      %p62 = scmp.ne.s32.totalorder %s53, %s54
      %p63 = scmp.eq.s32.totalorder %s22, 0
      %p64 = por %p62, %p63
      %p65 = scmp.ne.s32.totalorder %s53, %s54
      %p66 = scmp.eq.s32.totalorder %s23, 4
      %p67 = por %p65, %p66
      %p69 = scmp.ne.s32.totalorder %s54, %s68
      %p70 = scmp.eq.s32.totalorder %s23, 0
      %p71 = por %p69, %p70
      %s73 = sadd.s32 %s72, 1
      %p76 = scmp.eq.s32.totalorder %s17, 4
      %p77 = scmp.ne.s32.totalorder %s72, %s74
      %p78 = scmp.eq.s32.totalorder %s17, 0
      %p79 = por %p77, %p78
      %p80 = scmp.ne.s32.totalorder %s72, %s74
      %p81 = scmp.eq.s32.totalorder %s22, 4
      %p82 = por %p80, %p81
      %p83 = scmp.ne.s32.totalorder %s74, %s75
      %p84 = scmp.eq.s32.totalorder %s22, 0
      %p85 = por %p83, %p84
      %p86 = scmp.ne.s32.totalorder %s74, %s75
      %p87 = scmp.eq.s32.totalorder %s23, 4
      %p88 = por %p86, %p87
      %p90 = scmp.ne.s32.totalorder %s75, %s89
      %p91 = scmp.eq.s32.totalorder %s23, 0
      %p92 = por %p90, %p91
      %s93 = ssub.s32 %s17, %s24
      %p94 = scmp.eq.s32.totalorder %s93, 0
      %s96 = sadd.s32 %s95, 1
      %s97 = scalar_select %p94, %s95, %s96
      %p100 = pneg %p94
      %p101 = scmp.eq.s32.totalorder %s17, 4
      %p102 = por %p100, %p101
      %p103 = scmp.ne.s32.totalorder %s95, %s98
      %p104 = scmp.eq.s32.totalorder %s17, 0
      %p105 = por %p103, %p104
      %p106 = scmp.ne.s32.totalorder %s95, %s98
      %p107 = scmp.eq.s32.totalorder %s22, 4
      %p108 = por %p106, %p107
      %p109 = scmp.ne.s32.totalorder %s98, %s99
      %p110 = scmp.eq.s32.totalorder %s22, 0
      %p111 = por %p109, %p110
      %p112 = scmp.ne.s32.totalorder %s98, %s99
      %p113 = scmp.eq.s32.totalorder %s23, 4
      %p114 = por %p112, %p113
      %p116 = scmp.ne.s32.totalorder %s99, %s115
      %p117 = scmp.eq.s32.totalorder %s23, 0
      %p118 = por %p116, %p117
      %p119 = scmp.le.s32.totalorder 1, %s17
      %p120 = scmp.lt.s32.totalorder %s17, 6
      %p121 = pnand %p119, %p120
      %p122 = pneg %p121
      // Predicated region
      $region9: #{tpu_custom_call.1} parent=5 // pred_check
        _
      $region10: #{tpu_custom_call.1} parent=5 // pred_check_branch
        %124 = sbr.rel (%p121) target = $region12
      $region11: #{tpu_custom_call.1} parent=5 // pred_region
        %s125 = ssub.s32 %s17, 1
        // Predicated region
        $region13: #{tpu_custom_call.1} parent=11 // pred_check
          %p126 = pneg %p64
        $region14: #{tpu_custom_call.1} parent=11 // pred_check_branch
          %128 = sbr.rel (%p126) target = $region16
        $region15: #{tpu_custom_call.1} parent=11 // pred_region
          %s130 = ssub.s32 16, 16
          %131 = vsyncadd [#allocation6], %s130
          %s133 = sshll.u32 %s1, 4
          %s134 = int_to_ptr.vmem [resolvable:$true] %s133
          %136 = dma.vmem_to_smem %s134, 16, [#allocation7], [#allocation6]
        $region16: #{tpu_custom_call.1} parent=11 // pred_fallthru
          _
        // Predicated region
        $region17: #{tpu_custom_call.1} parent=11 // pred_check
          %p137 = pneg %p85
        $region18: #{tpu_custom_call.1} parent=11 // pred_check_branch
          %139 = sbr.rel (%p137) target = $region20
        $region19: #{tpu_custom_call.1} parent=11 // pred_region
          _
        $region20: #{tpu_custom_call.1} parent=11 // pred_fallthru
          _
      $region12: #{tpu_custom_call.1} parent=5 // pred_fallthru
        _
      %p140 = scmp.lt.s32.totalorder %s17, 5
      // Predicated region
      $region21: #{tpu_custom_call.1} parent=5 // pred_check
        %p141 = pneg %p140
      $region22: #{tpu_custom_call.1} parent=5 // pred_check_branch
        %143 = sbr.rel (%p141) target = $region24
      $region23: #{tpu_custom_call.1} parent=5 // pred_region
        // Predicated region
        $region25: #{tpu_custom_call.1} parent=23 // pred_check
          %p144 = pneg %p37
        $region26: #{tpu_custom_call.1} parent=23 // pred_check_branch
          %146 = sbr.rel (%p144) target = $region28
        $region27: #{tpu_custom_call.1} parent=23 // pred_region
          %s147 = sand.u32 %s27, 1
          %s148 = scalar_lea.sflag [#allocation4], %s147
          %s149 = sand.u32 %s27, 1
          %s150 = smul.addr %s149, 16
          %s151 = scalar_lea.vmem [#allocation3], %s150
          %s153 = ssub.s32 256, 256
          %154 = vsyncadd %s148, %s153
          %s155 = smul.addr %s17, 128
          %s156 = scalar_lea.hbm %s0, %s155
          %s157 = sshll.u32 %s151, 4
          %s158 = int_to_ptr.vmem [resolvable:$true] %s157
          %163 = dma.hbm_to_vmem [thread:$0]  %s156, 256, %s158, %s148, 640, 128, 8
        $region28: #{tpu_custom_call.1} parent=23 // pred_fallthru
          _
      $region24: #{tpu_custom_call.1} parent=5 // pred_fallthru
        _
      %p164 = scmp.le.s32.totalorder 1, %s17
      %p165 = scmp.lt.s32.totalorder %s17, 6
      %p166 = pnand %p164, %p165
      %p167 = pneg %p166
      // Predicated region
      $region29: #{tpu_custom_call.1} parent=5 // pred_check
        _
      $region30: #{tpu_custom_call.1} parent=5 // pred_check_branch
        %169 = sbr.rel (%p166) target = $region32
      $region31: #{tpu_custom_call.1} parent=5 // pred_region
        %s170 = ssub.s32 %s17, 1
        %s171 = sand.u32 %s30, 1
        %s172 = scalar_lea.sflag [#allocation4], %s171
        %s173 = sand.u32 %s30, 1
        %s174 = smul.addr %s173, 16
        %s175 = scalar_lea.vmem [#allocation3], %s174
        // Predicated region
        $region33: #{tpu_custom_call.1} parent=31 // pred_check
          %p176 = pneg %p43
        $region34: #{tpu_custom_call.1} parent=31 // pred_check_branch
          %178 = sbr.rel (%p176) target = $region36
        $region35: #{tpu_custom_call.1} parent=31 // pred_region
          %179 = dma.done %s172, 256
        $region36: #{tpu_custom_call.1} parent=31 // pred_fallthru
          _
        // Predicated region
        $region37: #{tpu_custom_call.1} parent=31 // pred_check
          %p180 = pneg %p64
        $region38: #{tpu_custom_call.1} parent=31 // pred_check_branch
          %182 = sbr.rel (%p180) target = $region40
        $region39: #{tpu_custom_call.1} parent=31 // pred_region
          %183 = dma.done [#allocation6], 16
        $region40: #{tpu_custom_call.1} parent=31 // pred_fallthru
          _
        %184 = sfence
        %s185 = sand.u32 %s30, 1
        %s186 = scalar_lea.sflag [#allocation4], %s185
        %s187 = sand.u32 %s30, 1
        %s188 = smul.addr %s187, 16
        %s189 = scalar_lea.vmem [#allocation3], %s188
        %p190 = pneg %p43
        %p191 = pneg %p40
        %p192 = pneg %p64
        %p193 = pneg %p61
        %p194 = pneg %p85
        %p195 = pneg %p82
        %p196 = pneg %p111
        %p197 = pneg %p108
        %s198 = sand.u32 %s98, 1
        %s199 = scalar_lea.sflag [#allocation5], %s198
        %s200 = sand.u32 %s98, 1
        %s201 = smul.addr %s200, 8
        %s202 = scalar_lea.vmem [#allocation8], %s201
        %v203 = vld [vmem:[%s175] sm:$0xff]
        %s204 = sld [smem:[#allocation7]]
        %v205 = vstv %s204
        %v206 = vmul.f32 %v203, %v205
        %s207 = sld [smem:[#allocation2]]
        %v208 = vstv %s207
        %v209 = vadd.f32 %v206, %v208
        %s210 = scalar_lea.vmem %s175, 8 [#allocation3]
        %v211 = vld [vmem:[%s210] sm:$0xff]
        %s212 = sld [smem:[#allocation7 + $0x1]]
        %v213 = vstv %s212
        %v214 = vmul.f32 %v211, %v213
        %v215 = vadd.f32 %v209, %v214
        %216 = vst [vmem:[%s202] sm:$0xff] %v215
        %s217 = sand.u32 %s98, 1
        %s218 = scalar_lea.sflag [#allocation5], %s217
        %s219 = sand.u32 %s98, 1
        %s220 = smul.addr %s219, 8
        %s221 = scalar_lea.vmem [#allocation8], %s220
        // Predicated region
        $region41: #{tpu_custom_call.1} parent=31 // pred_check
          %p222 = pneg %p108
        $region42: #{tpu_custom_call.1} parent=31 // pred_check_branch
          %224 = sbr.rel (%p222) target = $region44
        $region43: #{tpu_custom_call.1} parent=31 // pred_region
          %s226 = ssub.s32 128, 128
          %227 = vsyncadd %s218, %s226
          %s228 = smul.addr %s22, 128
          %s229 = scalar_lea.hbm %s3, %s228
          %s231 = sshll.u32 %s221, 4
          %s232 = int_to_ptr.vmem [resolvable:$true] %s231
          %234 = dma.vmem_to_hbm [thread:$0]  %s232, 128, %s229, %s218
        $region44: #{tpu_custom_call.1} parent=31 // pred_fallthru
          _
      $region32: #{tpu_custom_call.1} parent=5 // pred_fallthru
        _
      %p235 = scmp.le.s32.totalorder 2, %s17
      // Predicated region
      $region45: #{tpu_custom_call.1} parent=5 // pred_check
        %p236 = pneg %p235
      $region46: #{tpu_custom_call.1} parent=5 // pred_check_branch
        %238 = sbr.rel (%p236) target = $region48
      $region47: #{tpu_custom_call.1} parent=5 // pred_region
        %s239 = ssub.s32 %s17, 2
        // Predicated region
        $region49: #{tpu_custom_call.1} parent=47 // pred_check
          %p240 = pneg %p114
        $region50: #{tpu_custom_call.1} parent=47 // pred_check_branch
          %242 = sbr.rel (%p240) target = $region52
        $region51: #{tpu_custom_call.1} parent=47 // pred_region
          %s243 = sand.u32 %s99, 1
          %s244 = scalar_lea.sflag [#allocation5], %s243
          %s245 = sand.u32 %s99, 1
          %s246 = smul.addr %s245, 8
          %s247 = scalar_lea.vmem [#allocation8], %s246
          %248 = dma.done %s244, 128
        $region52: #{tpu_custom_call.1} parent=47 // pred_fallthru
          _
      $region48: #{tpu_custom_call.1} parent=5 // pred_fallthru
        _
    $region6: #{tpu_custom_call.1} parent=1 // loop_footer
      %s21 = sadd.s32 1, %s17
    $region7: #{tpu_custom_call.1} parent=1 // loop_footer_branch
      %16 = sbr.rel target = $region3
    $region8: #{tpu_custom_call.1} parent=1 // loop_exit
      _
    %249 = vsyncpa [#allocation4], 1
    %s250 = scalar_lea.sflag [#allocation4], 1
    %251 = vsyncpa %s250, 1
    %252 = vsyncpa [#allocation5], 1
    %s253 = scalar_lea.sflag [#allocation5], 1
    %254 = vsyncpa %s253, 1
    %255 = vsyncpa [#allocation6], 1
    %s256 = scalar_lea.sflag [#allocation6], 1
    %257 = vsyncpa %s256, 1

</llo_original>
